<compile_context>
chip_gen: v6e
topology: v6e:2x2x1
jax: 0.10.0
libtpu: 0.0.40
codegen_flags: <defaults>
</compile_context>

<pallas_src>
import functools

import jax
import jax.numpy as jnp
from jax.experimental import pallas as pl
from jax.experimental.pallas import tpu as pltpu


def _round_up(x, m):
    return ((x + m - 1) // m) * m


def _pick_tile_b(batch, n_pos, n_neg, itemsize):
    """Batch tile (multiple of 128): big enough to amortize per-step overhead,
    small enough that inputs + f32 intermediates stay well inside VMEM."""
    lane_n = _round_up(max(n_neg, 1), 128)
    lane_p = _round_up(max(n_pos, 1), 128)
    # VMEM bytes per row of tile_b:
    #   - double-buffered input blocks (native dtype, lanes padded to 128)
    #   - f32 intermediates: upcast n, logsig_neg, adv z & e (~4x lane_n),
    #     upcast p / logsig_pos (~2x lane_p)
    #   - double-buffered (tile_b, 2) f32 output block (lanes pad to 128)
    per_row = (2 * (lane_n + lane_p) * itemsize
               + (4 * lane_n + 2 * lane_p) * 4
               + 2 * 128 * 4)
    budget = 20 * 1024 * 1024                       # < 32 MiB scoped default
    max_tb = max(128, (budget // per_row) // 128 * 128)

    # Target a few MiB of n_score HBM payload per grid step so the ~0.35 us
    # fixed per-step overhead is well amortized.
    target_payload = 4 * 1024 * 1024
    tb_payload = max(128, (target_payload // max(n_neg * itemsize, 1)) // 128 * 128)

    tb = min(max_tb, tb_payload)

    # Never over-tile a small batch; for larger batches keep >= 2 grid steps so
    # the parallel batch axis can be split across v7x's two TensorCores.
    tb = min(tb, _round_up(batch, 128))
    if batch >= 256:
        tb = min(tb, _round_up((batch + 1) // 2, 128))
    return int(tb)


def _sigmoid_loss_kernel(p_ref, n_ref, out_ref, *, margin, sub_margin,
                         add_margin, adv_temperature, batch):
    tile_b = n_ref.shape[0]
    row_start = pl.program_id(0) * tile_b

    p = p_ref[...].astype(jnp.float32)   # (TB, P)  batch on sublanes
    n = n_ref[...].astype(jnp.float32)   # (TB, N)  negatives on lanes

    m = jnp.float32(margin)
    if sub_margin:
        p = m - p
        n = m - n
    if add_margin:
        p = m + p
        n = m + n

    # log_sigmoid(-n) = -softplus(n): one exp + one log1p per element (EUP).
    logsig_neg = -(jnp.maximum(n, 0.0) + jnp.log1p(jnp.exp(-jnp.abs(n))))   # (TB, N)

    if adv_temperature is not None:
        # Self-adversarial weighting (softmax over negatives). torch's
        # .detach() only changes gradients; the forward value is identical.
        z = n * jnp.float32(adv_temperature)
        e = jnp.exp(z - jnp.max(z, axis=1, keepdims=True))
        probs = e / jnp.sum(e, axis=1, keepdims=True)                       # exact divide
        neg_row = jnp.sum(probs * logsig_neg, axis=1, keepdims=True)        # (TB, 1)
    else:
        neg_row = jnp.mean(logsig_neg, axis=1, keepdims=True)               # (TB, 1)

    # log_sigmoid(p) = min(p, 0) - log1p(exp(-|p|)); sum over the P positives.
    logsig_pos = jnp.minimum(p, 0.0) - jnp.log1p(jnp.exp(-jnp.abs(p)))      # (TB, P)
    pos_row = jnp.sum(logsig_pos, axis=1, keepdims=True)                    # (TB, 1)

    # Select-based masking of the out-of-bounds tail rows of the last tile
    # (their contents are unspecified garbage; where() never lets it through).
    valid = (jax.lax.broadcasted_iota(jnp.int32, (tile_b, 1), 0) + row_start) < batch
    out_ref[:, 0:1] = jnp.where(valid, pos_row, 0.0)
    out_ref[:, 1:2] = jnp.where(valid, neg_row, 0.0)


def sigmoid_loss_origin(p_score, n_score, *, margin=6.0, adv_temperature=None,
                        sub_margin=False, add_margin=False):
    """Returns (loss, loss_record) mirroring SigmoidLossOrigin.forward
    (args.subsampling == False branch). loss_record holds device arrays."""
    assert p_score.ndim == 2 and n_score.ndim == 2
    assert p_score.shape[0] == n_score.shape[0]
    B, P = p_score.shape
    _, N = n_score.shape

    itemsize = jnp.dtype(n_score.dtype).itemsize
    tile_b = _pick_tile_b(B, P, N, itemsize)
    num_tiles = int(pl.cdiv(B, tile_b))

    kernel = functools.partial(
        _sigmoid_loss_kernel,
        margin=float(margin),
        sub_margin=sub_margin,
        add_margin=add_margin,
        adv_temperature=(None if adv_temperature is None else float(adv_temperature)),
        batch=B,
    )

    partials = pl.pallas_call(
        kernel,
        out_shape=jax.ShapeDtypeStruct((num_tiles * tile_b, 2), jnp.float32),
        grid_spec=pltpu.PrefetchScalarGridSpec(
            num_scalar_prefetch=0,
            grid=(num_tiles,),
            in_specs=[
                pl.BlockSpec((tile_b, P), lambda i: (i, 0)),   # positives (native dtype)
                pl.BlockSpec((tile_b, N), lambda i: (i, 0)),   # negatives (native dtype)
            ],
            out_specs=pl.BlockSpec((tile_b, 2), lambda i: (i, 0)),
        ),
        compiler_params=pltpu.CompilerParams(
            dimension_semantics=(pltpu.PARALLEL,),
            vmem_limit_bytes=32 * 1024 * 1024,     # never below the scoped default
        ),
    )(p_score, n_score)

    pos_total = jnp.sum(partials[:, 0])
    neg_total = jnp.sum(partials[:, 1])

    positive_sample_loss = -pos_total / jnp.float32(B * P)
    negative_sample_loss = -neg_total / jnp.float32(B)
    loss = (positive_sample_loss + negative_sample_loss) / 2.0

    # Keep device arrays (no .item()/float() host syncs); caller can convert lazily.
    loss_record = {
        "hard_positive_sample_loss": positive_sample_loss,
        "hard_negative_sample_loss": negative_sample_loss,
        "hard_loss": loss,
    }
    return loss, loss_record


def _reference(p_score, n_score, margin=6.0, adv_temperature=None,
               sub_margin=False, add_margin=False):
    p, n = p_score.astype(jnp.float32), n_score.astype(jnp.float32)
    if sub_margin:
        p, n = margin - p, margin - n
    if add_margin:
        p, n = margin + p, margin + n
    ls_neg = jax.nn.log_sigmoid(-n)
    if adv_temperature is not None:
        neg = jnp.sum(jax.nn.softmax(n * adv_temperature, axis=1) * ls_neg, axis=1)
    else:
        neg = jnp.mean(ls_neg, axis=1)
    pos = jax.nn.log_sigmoid(p)
    return (-jnp.mean(pos) + -jnp.mean(neg)) / 2.0


if __name__ == "__main__":
    key = jax.random.PRNGKey(0)
    k1, k2, k3, k4 = jax.random.split(key, 4)

    # Small production-like shapes (single tile, partial block, masked tail).
    B, P, N = 8, 1, 64
    p_score = 6.0 * jax.random.normal(k1, (B, P), dtype=jnp.float32)
    n_score = 6.0 * jax.random.normal(k2, (B, N), dtype=jnp.float32)

    # Plain (mean) negative path, sub_margin=True.
    loss, record = sigmoid_loss_origin(p_score, n_score, margin=6.0, sub_margin=True)
    loss = jax.block_until_ready(loss)
    ref = _reference(p_score, n_score, margin=6.0, sub_margin=True)
    assert jnp.allclose(loss, ref, rtol=1e-5, atol=1e-5), (loss, ref)

    # Self-adversarial path (exact softmax divide -> tight tolerance).
    loss_adv, _ = sigmoid_loss_origin(p_score, n_score, margin=6.0, adv_temperature=1.0)
    loss_adv = jax.block_until_ready(loss_adv)
    ref_adv = _reference(p_score, n_score, margin=6.0, adv_temperature=1.0)
    assert jnp.allclose(loss_adv, ref_adv, rtol=1e-5, atol=1e-5), (loss_adv, ref_adv)

    # Multi-tile case: 2 grid steps, partial trailing tile, no wrapper padding.
    B2, N2 = 300, 256
    p2 = 6.0 * jax.random.normal(k3, (B2, P), dtype=jnp.float32)
    n2 = 6.0 * jax.random.normal(k4, (B2, N2), dtype=jnp.float32)
    loss2, _ = sigmoid_loss_origin(p2, n2, margin=6.0, adv_temperature=0.5)
    loss2 = jax.block_until_ready(loss2)
    ref2 = _reference(p2, n2, margin=6.0, adv_temperature=0.5)
    assert jnp.allclose(loss2, ref2, rtol=1e-5, atol=1e-5), (loss2, ref2)

    # bf16 inputs fed straight through (kernel upcasts per tile).
    p2_bf, n2_bf = p2.astype(jnp.bfloat16), n2.astype(jnp.bfloat16)
    loss_bf, _ = sigmoid_loss_origin(p2_bf, n2_bf, margin=6.0)
    loss_bf = jax.block_until_ready(loss_bf)
    ref_bf = _reference(p2_bf.astype(jnp.float32), n2_bf.astype(jnp.float32), margin=6.0)
    assert jnp.allclose(loss_bf, ref_bf, rtol=2e-2, atol=2e-2), (loss_bf, ref_bf)

    print("KERNEL_OK")
</pallas_src>

<mosaic_0001>
module attributes {stable_mosaic.version = 11 : i64} {
  func.func @_sigmoid_loss_kernel(%arg0: i32, %arg1: memref<128x1xf32, #tpu.memory_space<vmem>>, %arg2: memref<128x64xf32, #tpu.memory_space<vmem>>, %arg3: memref<128x2xf32, #tpu.memory_space<vmem>>) attributes {dimension_semantics = [#tpu.dimension_semantics<parallel>], iteration_bounds = array<i64: 1>, scalar_prefetch = 0 : i64, scratch_operands = 0 : i64, tpu.core_type = #tpu.core_type<tc>, window_params = [{transform_indices = @transform_0, window_bounds = array<i64: 128, 1>}, {transform_indices = @transform_1, window_bounds = array<i64: 128, 64>}, {transform_indices = @transform_2, window_bounds = array<i64: 128, 2>}]} {
    %c128_i32 = arith.constant 128 : i32
    %0 = arith.muli %arg0, %c128_i32 : i32
    %c0 = arith.constant 0 : index
    %c0_0 = arith.constant 0 : index
    %1 = vector.load %arg1[%c0, %c0_0] : memref<128x1xf32, #tpu.memory_space<vmem>>, vector<128x1xf32>
    %c0_1 = arith.constant 0 : index
    %c0_2 = arith.constant 0 : index
    %2 = vector.load %arg2[%c0_1, %c0_2] : memref<128x64xf32, #tpu.memory_space<vmem>>, vector<128x64xf32>
    %cst = arith.constant 6.000000e+00 : f32
    %3 = vector.broadcast %cst : f32 to vector<128x1xf32>
    %4 = arith.subf %3, %1 : vector<128x1xf32>
    %cst_3 = arith.constant 6.000000e+00 : f32
    %5 = vector.broadcast %cst_3 : f32 to vector<128x64xf32>
    %6 = arith.subf %5, %2 : vector<128x64xf32>
    %cst_4 = arith.constant 0.000000e+00 : f32
    %7 = vector.broadcast %cst_4 : f32 to vector<128x64xf32>
    %8 = arith.maximumf %6, %7 : vector<128x64xf32>
    %9 = math.absf %6 : vector<128x64xf32>
    %cst_5 = arith.constant 0.000000e+00 : f32
    %10 = vector.broadcast %cst_5 : f32 to vector<128x64xf32>
    %11 = arith.subf %10, %9 : vector<128x64xf32>
    %12 = math.exp %11 : vector<128x64xf32>
    %13 = math.log1p %12 : vector<128x64xf32>
    %14 = arith.addf %8, %13 : vector<128x64xf32>
    %cst_6 = arith.constant 0.000000e+00 : f32
    %15 = vector.broadcast %cst_6 : f32 to vector<128x64xf32>
    %16 = arith.subf %15, %14 : vector<128x64xf32>
    %cst_7 = arith.constant dense<0.000000e+00> : vector<128xf32>
    %17 = vector.multi_reduction <add>, %16, %cst_7 [1] : vector<128x64xf32> to vector<128xf32>
    %18 = vector.shape_cast %17 : vector<128xf32> to vector<128x1xf32>
    %cst_8 = arith.constant 6.400000e+01 : f32
    %19 = vector.broadcast %cst_8 : f32 to vector<128x1xf32>
    %20 = arith.divf %18, %19 : vector<128x1xf32>
    %cst_9 = arith.constant 0.000000e+00 : f32
    %21 = vector.broadcast %cst_9 : f32 to vector<128x1xf32>
    %22 = arith.minimumf %4, %21 : vector<128x1xf32>
    %23 = math.absf %4 : vector<128x1xf32>
    %cst_10 = arith.constant 0.000000e+00 : f32
    %24 = vector.broadcast %cst_10 : f32 to vector<128x1xf32>
    %25 = arith.subf %24, %23 : vector<128x1xf32>
    %26 = math.exp %25 : vector<128x1xf32>
    %27 = math.log1p %26 : vector<128x1xf32>
    %28 = arith.subf %22, %27 : vector<128x1xf32>
    %cst_11 = arith.constant dense<0.000000e+00> : vector<128xf32>
    %29 = vector.multi_reduction <add>, %28, %cst_11 [1] : vector<128x1xf32> to vector<128xf32>
    %30 = vector.shape_cast %29 : vector<128xf32> to vector<128x1xf32>
    %31 = tpu.iota {dimensions = array<i32: 0>} : vector<128x1xi32>
    %32 = vector.broadcast %0 : i32 to vector<128x1xi32>
    %33 = arith.addi %31, %32 : vector<128x1xi32>
    %c8_i32 = arith.constant 8 : i32
    %34 = vector.broadcast %c8_i32 : i32 to vector<128x1xi32>
    %35 = arith.cmpi slt, %33, %34 : vector<128x1xi32>
    %cst_12 = arith.constant 0.000000e+00 : f32
    %36 = vector.broadcast %cst_12 : f32 to vector<128x1xf32>
    %37 = arith.select %35, %30, %36 : vector<128x1xi1>, vector<128x1xf32>
    %c0_13 = arith.constant 0 : index
    %c0_14 = arith.constant 0 : index
    %38 = vector.load %arg3[%c0_13, %c0_14] : memref<128x2xf32, #tpu.memory_space<vmem>>, vector<128x1xf32>
    tpu.vector_store %arg3[%c0_13, %c0_14], %37 {strides = array<i32>} : memref<128x2xf32, #tpu.memory_space<vmem>>, vector<128x1xf32>,
    %cst_15 = arith.constant 0.000000e+00 : f32
    %39 = vector.broadcast %cst_15 : f32 to vector<128x1xf32>
    %40 = arith.select %35, %20, %39 : vector<128x1xi1>, vector<128x1xf32>
    %c0_16 = arith.constant 0 : index
    %c1 = arith.constant 1 : index
    %41 = vector.load %arg3[%c0_16, %c1] : memref<128x2xf32, #tpu.memory_space<vmem>>, vector<128x1xf32>
    tpu.vector_store %arg3[%c0_16, %c1], %40 {strides = array<i32>} : memref<128x2xf32, #tpu.memory_space<vmem>>, vector<128x1xf32>,
    return
  }
  func.func @transform_0(%arg0: i32) -> (i32, i32) {
    %c0_i32 = arith.constant 0 : i32
    %c0_i32_0 = arith.constant 0 : i32
    return %arg0, %c0_i32 : i32, i32
  }
  func.func @transform_1(%arg0: i32) -> (i32, i32) {
    %c0_i32 = arith.constant 0 : i32
    %c0_i32_0 = arith.constant 0 : i32
    return %arg0, %c0_i32 : i32, i32
  }
  func.func @transform_2(%arg0: i32) -> (i32, i32) {
    %c0_i32 = arith.constant 0 : i32
    %c0_i32_0 = arith.constant 0 : i32
    return %arg0, %c0_i32 : i32, i32
  }
}

</mosaic_0001>

<llo_original>
// kernel: tpu_custom_call.1
$region0: #{tpu_custom_call.1}
  #allocation0 [shape = 'u32[]', space=smem, size = 0x4, offset = 0x4, fixed_abs, tag = 'smem constant byte address 0x4 - core index']
  #allocation1 [shape = 'u32[144,128]{1,0:T(1,128)}', space=vmem, size = 0x12000, scoped, tag = 'internal scratch']
  %s0 = inlined_call_operand.vmem [shape: f32[8,1], index: 0, kind: input, shape index: {}]
  %s1 = inlined_call_operand.vmem [shape: f32[8,64], index: 1, kind: input, shape index: {}]
  %s2 = inlined_call_operand.vmem [shape: f32[128,2], index: 2, kind: output, shape index: {}]
  %s3 = sld [smem:[#allocation0]]
  $region18: #{tpu_custom_call.1} parent=0
    _
  %s5 = ssub.s32 1, %s3
  %s6 = scalar_select 0, %s5, %s3
  // Predicated region
  $region2: #{tpu_custom_call.1} parent=0 // pred_check
    _
  $region3: #{tpu_custom_call.1} parent=0 // pred_check_branch
    %8 = sbr.rel (0) target = $region5
  $region4: #{tpu_custom_call.1} parent=0 // pred_region
    _
  $region5: #{tpu_custom_call.1} parent=0 // pred_fallthru
    _
  // Predicated region
  $region6: #{tpu_custom_call.1} parent=0 // pred_check
    _
  $region7: #{tpu_custom_call.1} parent=0 // pred_check_branch
    %10 = sbr.rel (0) target = $region9
  $region8: #{tpu_custom_call.1} parent=0 // pred_region
    _
  $region9: #{tpu_custom_call.1} parent=0 // pred_fallthru
    _
  %s11 = smul.u32 0, 128
  %v12 = vld [vmem:[%s0] sm:$0xff]
  %v13 = vld [vmem:[%s0 + $0x8] sm:$0xff]
  %v14 = vld [vmem:[%s0 + $0x10] sm:$0xff]
  %v15 = vld [vmem:[%s0 + $0x18] sm:$0xff]
  %v16 = vld [vmem:[%s0 + $0x20] sm:$0xff]
  %v17 = vld [vmem:[%s0 + $0x28] sm:$0xff]
  %v18 = vld [vmem:[%s0 + $0x30] sm:$0xff]
  %v19 = vld [vmem:[%s0 + $0x38] sm:$0xff]
  %v20 = vld [vmem:[%s0 + $0x40] sm:$0xff]
  %v21 = vld [vmem:[%s0 + $0x48] sm:$0xff]
  %v22 = vld [vmem:[%s0 + $0x50] sm:$0xff]
  %v23 = vld [vmem:[%s0 + $0x58] sm:$0xff]
  %v24 = vld [vmem:[%s0 + $0x60] sm:$0xff]
  %v25 = vld [vmem:[%s0 + $0x68] sm:$0xff]
  %v26 = vld [vmem:[%s0 + $0x70] sm:$0xff]
  %v27 = vld [vmem:[%s0 + $0x78] sm:$0xff]
  %v28 = vld [vmem:[%s1] sm:$0xff]
  %v29 = vld [vmem:[%s1 + $0x8] sm:$0xff]
  %v30 = vld [vmem:[%s1 + $0x10] sm:$0xff]
  %v31 = vld [vmem:[%s1 + $0x18] sm:$0xff]
  %v32 = vld [vmem:[%s1 + $0x20] sm:$0xff]
  %v33 = vld [vmem:[%s1 + $0x28] sm:$0xff]
  %v34 = vld [vmem:[%s1 + $0x30] sm:$0xff]
  %v35 = vld [vmem:[%s1 + $0x38] sm:$0xff]
  %v36 = vld [vmem:[%s1 + $0x40] sm:$0xff]
  %v37 = vld [vmem:[%s1 + $0x48] sm:$0xff]
  %v38 = vld [vmem:[%s1 + $0x50] sm:$0xff]
  %v39 = vld [vmem:[%s1 + $0x58] sm:$0xff]
  %v40 = vld [vmem:[%s1 + $0x60] sm:$0xff]
  %v41 = vld [vmem:[%s1 + $0x68] sm:$0xff]
  %v42 = vld [vmem:[%s1 + $0x70] sm:$0xff]
  %v43 = vld [vmem:[%s1 + $0x78] sm:$0xff]
  %v44 = vsub.f32 6.0, %v12
  %v45 = vsub.f32 6.0, %v13
  %v46 = vsub.f32 6.0, %v14
  %v47 = vsub.f32 6.0, %v15
  %v48 = vsub.f32 6.0, %v16
  %v49 = vsub.f32 6.0, %v17
  %v50 = vsub.f32 6.0, %v18
  %v51 = vsub.f32 6.0, %v19
  %v52 = vsub.f32 6.0, %v20
  %v53 = vsub.f32 6.0, %v21
  %v54 = vsub.f32 6.0, %v22
  %v55 = vsub.f32 6.0, %v23
  %v56 = vsub.f32 6.0, %v24
  %v57 = vsub.f32 6.0, %v25
  %v58 = vsub.f32 6.0, %v26
  %v59 = vsub.f32 6.0, %v27
  %v60 = vsub.f32 6.0, %v28
  %v61 = vsub.f32 6.0, %v29
  %v62 = vsub.f32 6.0, %v30
  %v63 = vsub.f32 6.0, %v31
  %v64 = vsub.f32 6.0, %v32
  %v65 = vsub.f32 6.0, %v33
  %v66 = vsub.f32 6.0, %v34
  %v67 = vsub.f32 6.0, %v35
  %v68 = vsub.f32 6.0, %v36
  %v69 = vsub.f32 6.0, %v37
  %v70 = vsub.f32 6.0, %v38
  %v71 = vsub.f32 6.0, %v39
  %v72 = vsub.f32 6.0, %v40
  %v73 = vsub.f32 6.0, %v41
  %v74 = vsub.f32 6.0, %v42
  %v75 = vsub.f32 6.0, %v43
  %v76 = vmax.f32 %v60, 0.0
  %v77 = vmax.f32 %v61, 0.0
  %v78 = vmax.f32 %v62, 0.0
  %v79 = vmax.f32 %v63, 0.0
  %v80 = vmax.f32 %v64, 0.0
  %v81 = vmax.f32 %v65, 0.0
  %v82 = vmax.f32 %v66, 0.0
  %v83 = vmax.f32 %v67, 0.0
  %v84 = vmax.f32 %v68, 0.0
  %v85 = vmax.f32 %v69, 0.0
  %v86 = vmax.f32 %v70, 0.0
  %v87 = vmax.f32 %v71, 0.0
  %v88 = vmax.f32 %v72, 0.0
  %v89 = vmax.f32 %v73, 0.0
  %v90 = vmax.f32 %v74, 0.0
  %v91 = vmax.f32 %v75, 0.0
  %v92 = vand.u32 2147483647, %v60
  %v93 = vand.u32 2147483647, %v61
  %v94 = vand.u32 2147483647, %v62
  %v95 = vand.u32 2147483647, %v63
  %v96 = vand.u32 2147483647, %v64
  %v97 = vand.u32 2147483647, %v65
  %v98 = vand.u32 2147483647, %v66
  %v99 = vand.u32 2147483647, %v67
  %v100 = vand.u32 2147483647, %v68
  %v101 = vand.u32 2147483647, %v69
  %v102 = vand.u32 2147483647, %v70
  %v103 = vand.u32 2147483647, %v71
  %v104 = vand.u32 2147483647, %v72
  %v105 = vand.u32 2147483647, %v73
  %v106 = vand.u32 2147483647, %v74
  %v107 = vand.u32 2147483647, %v75
  %v108 = vsub.f32 0.0, %v92
  %v109 = vsub.f32 0.0, %v93
  %v110 = vsub.f32 0.0, %v94
  %v111 = vsub.f32 0.0, %v95
  %v112 = vsub.f32 0.0, %v96
  %v113 = vsub.f32 0.0, %v97
  %v114 = vsub.f32 0.0, %v98
  %v115 = vsub.f32 0.0, %v99
  %v116 = vsub.f32 0.0, %v100
  %v117 = vsub.f32 0.0, %v101
  %v118 = vsub.f32 0.0, %v102
  %v119 = vsub.f32 0.0, %v103
  %v120 = vsub.f32 0.0, %v104
  %v121 = vsub.f32 0.0, %v105
  %v122 = vsub.f32 0.0, %v106
  %v123 = vsub.f32 0.0, %v107
  %v124 = vmul.f32 %v108, 1.442695
  %v125 = vpow.pop %v124
  %v126 = vmul.f32 %v109, 1.442695
  %v127 = vpow.pop %v126
  %v128 = vmul.f32 %v110, 1.442695
  %v129 = vpow.pop %v128
  %v130 = vmul.f32 %v111, 1.442695
  %v131 = vpow.pop %v130
  %v132 = vmul.f32 %v112, 1.442695
  %v133 = vpow.pop %v132
  %v134 = vmul.f32 %v113, 1.442695
  %v135 = vpow.pop %v134
  %v136 = vmul.f32 %v114, 1.442695
  %v137 = vpow.pop %v136
  %v138 = vmul.f32 %v115, 1.442695
  %v139 = vpow.pop %v138
  %v140 = vmul.f32 %v116, 1.442695
  %v141 = vpow.pop %v140
  %v142 = vmul.f32 %v117, 1.442695
  %v143 = vpow.pop %v142
  %v144 = vmul.f32 %v118, 1.442695
  %v145 = vpow.pop %v144
  %v146 = vmul.f32 %v119, 1.442695
  %v147 = vpow.pop %v146
  %v148 = vmul.f32 %v120, 1.442695
  %v149 = vpow.pop %v148
  %v150 = vmul.f32 %v121, 1.442695
  %v151 = vpow.pop %v150
  %v152 = vmul.f32 %v122, 1.442695
  %v153 = vpow.pop %v152
  %v154 = vmul.f32 %v123, 1.442695
  %v155 = vpow.pop %v154
  %v156 = vadd.f32 %v125, 1.0
  %v157 = vlog2.pop %v156
  %v158 = vmul.f32 %v157, 0.6931472
  %v159 = vmul.f32 -0.5, %v125
  %v160 = vadd.f32 %v159, 1.0
  %v161 = vmul.f32 %v160, %v125
  %v162 = vand.u32 2147483647, %v125
  %vm163 = vcmp.lt.f32.partialorder %v162, 0.0004427343
  %v164 = vsel %vm163, %v161, %v158
  %v165 = vadd.f32 %v127, 1.0
  %v166 = vlog2.pop %v165
  %v167 = vmul.f32 %v166, 0.6931472
  %v168 = vmul.f32 -0.5, %v127
  %v169 = vadd.f32 %v168, 1.0
  %v170 = vmul.f32 %v169, %v127
  %v171 = vand.u32 2147483647, %v127
  %vm172 = vcmp.lt.f32.partialorder %v171, 0.0004427343
  %v173 = vsel %vm172, %v170, %v167
  %v174 = vadd.f32 %v129, 1.0
  %v175 = vlog2.pop %v174
  %v176 = vmul.f32 %v175, 0.6931472
  %v177 = vmul.f32 -0.5, %v129
  %v178 = vadd.f32 %v177, 1.0
  %v179 = vmul.f32 %v178, %v129
  %v180 = vand.u32 2147483647, %v129
  %vm181 = vcmp.lt.f32.partialorder %v180, 0.0004427343
  %v182 = vsel %vm181, %v179, %v176
  %v183 = vadd.f32 %v131, 1.0
  %v184 = vlog2.pop %v183
  %v185 = vmul.f32 %v184, 0.6931472
  %v186 = vmul.f32 -0.5, %v131
  %v187 = vadd.f32 %v186, 1.0
  %v188 = vmul.f32 %v187, %v131
  %v189 = vand.u32 2147483647, %v131
  %vm190 = vcmp.lt.f32.partialorder %v189, 0.0004427343
  %v191 = vsel %vm190, %v188, %v185
  %v192 = vadd.f32 %v133, 1.0
  %v193 = vlog2.pop %v192
  %v194 = vmul.f32 %v193, 0.6931472
  %v195 = vmul.f32 -0.5, %v133
  %v196 = vadd.f32 %v195, 1.0
  %v197 = vmul.f32 %v196, %v133
  %v198 = vand.u32 2147483647, %v133
  %vm199 = vcmp.lt.f32.partialorder %v198, 0.0004427343
  %v200 = vsel %vm199, %v197, %v194
  %v201 = vadd.f32 %v135, 1.0
  %v202 = vlog2.pop %v201
  %v203 = vmul.f32 %v202, 0.6931472
  %v204 = vmul.f32 -0.5, %v135
  %v205 = vadd.f32 %v204, 1.0
  %v206 = vmul.f32 %v205, %v135
  %v207 = vand.u32 2147483647, %v135
  %vm208 = vcmp.lt.f32.partialorder %v207, 0.0004427343
  %v209 = vsel %vm208, %v206, %v203
  %v210 = vadd.f32 %v137, 1.0
  %v211 = vlog2.pop %v210
  %v212 = vmul.f32 %v211, 0.6931472
  %v213 = vmul.f32 -0.5, %v137
  %v214 = vadd.f32 %v213, 1.0
  %v215 = vmul.f32 %v214, %v137
  %v216 = vand.u32 2147483647, %v137
  %vm217 = vcmp.lt.f32.partialorder %v216, 0.0004427343
  %v218 = vsel %vm217, %v215, %v212
  %v219 = vadd.f32 %v139, 1.0
  %v220 = vlog2.pop %v219
  %v221 = vmul.f32 %v220, 0.6931472
  %v222 = vmul.f32 -0.5, %v139
  %v223 = vadd.f32 %v222, 1.0
  %v224 = vmul.f32 %v223, %v139
  %v225 = vand.u32 2147483647, %v139
  %vm226 = vcmp.lt.f32.partialorder %v225, 0.0004427343
  %v227 = vsel %vm226, %v224, %v221
  %v228 = vadd.f32 %v141, 1.0
  %v229 = vlog2.pop %v228
  %v230 = vmul.f32 %v229, 0.6931472
  %v231 = vmul.f32 -0.5, %v141
  %v232 = vadd.f32 %v231, 1.0
  %v233 = vmul.f32 %v232, %v141
  %v234 = vand.u32 2147483647, %v141
  %vm235 = vcmp.lt.f32.partialorder %v234, 0.0004427343
  %v236 = vsel %vm235, %v233, %v230
  %v237 = vadd.f32 %v143, 1.0
  %v238 = vlog2.pop %v237
  %v239 = vmul.f32 %v238, 0.6931472
  %v240 = vmul.f32 -0.5, %v143
  %v241 = vadd.f32 %v240, 1.0
  %v242 = vmul.f32 %v241, %v143
  %v243 = vand.u32 2147483647, %v143
  %vm244 = vcmp.lt.f32.partialorder %v243, 0.0004427343
  %v245 = vsel %vm244, %v242, %v239
  %v246 = vadd.f32 %v145, 1.0
  %v247 = vlog2.pop %v246
  %v248 = vmul.f32 %v247, 0.6931472
  %v249 = vmul.f32 -0.5, %v145
  %v250 = vadd.f32 %v249, 1.0
  %v251 = vmul.f32 %v250, %v145
  %v252 = vand.u32 2147483647, %v145
  %vm253 = vcmp.lt.f32.partialorder %v252, 0.0004427343
  %v254 = vsel %vm253, %v251, %v248
  %v255 = vadd.f32 %v147, 1.0
  %v256 = vlog2.pop %v255
  %v257 = vmul.f32 %v256, 0.6931472
  %v258 = vmul.f32 -0.5, %v147
  %v259 = vadd.f32 %v258, 1.0
  %v260 = vmul.f32 %v259, %v147
  %v261 = vand.u32 2147483647, %v147
  %vm262 = vcmp.lt.f32.partialorder %v261, 0.0004427343
  %v263 = vsel %vm262, %v260, %v257
  %v264 = vadd.f32 %v149, 1.0
  %v265 = vlog2.pop %v264
  %v266 = vmul.f32 %v265, 0.6931472
  %v267 = vmul.f32 -0.5, %v149
  %v268 = vadd.f32 %v267, 1.0
  %v269 = vmul.f32 %v268, %v149
  %v270 = vand.u32 2147483647, %v149
  %vm271 = vcmp.lt.f32.partialorder %v270, 0.0004427343
  %v272 = vsel %vm271, %v269, %v266
  %v273 = vadd.f32 %v151, 1.0
  %v274 = vlog2.pop %v273
  %v275 = vmul.f32 %v274, 0.6931472
  %v276 = vmul.f32 -0.5, %v151
  %v277 = vadd.f32 %v276, 1.0
  %v278 = vmul.f32 %v277, %v151
  %v279 = vand.u32 2147483647, %v151
  %vm280 = vcmp.lt.f32.partialorder %v279, 0.0004427343
  %v281 = vsel %vm280, %v278, %v275
  %v282 = vadd.f32 %v153, 1.0
  %v283 = vlog2.pop %v282
  %v284 = vmul.f32 %v283, 0.6931472
  %v285 = vmul.f32 -0.5, %v153
  %v286 = vadd.f32 %v285, 1.0
  %v287 = vmul.f32 %v286, %v153
  %v288 = vand.u32 2147483647, %v153
  %vm289 = vcmp.lt.f32.partialorder %v288, 0.0004427343
  %v290 = vsel %vm289, %v287, %v284
  %v291 = vadd.f32 %v155, 1.0
  %v292 = vlog2.pop %v291
  %v293 = vmul.f32 %v292, 0.6931472
  %v294 = vmul.f32 -0.5, %v155
  %v295 = vadd.f32 %v294, 1.0
  %v296 = vmul.f32 %v295, %v155
  %v297 = vand.u32 2147483647, %v155
  %vm298 = vcmp.lt.f32.partialorder %v297, 0.0004427343
  %v299 = vsel %vm298, %v296, %v293
  %v300 = vadd.f32 %v76, %v164
  %v301 = vadd.f32 %v77, %v173
  %v302 = vadd.f32 %v78, %v182
  %v303 = vadd.f32 %v79, %v191
  %v304 = vadd.f32 %v80, %v200
  %v305 = vadd.f32 %v81, %v209
  %v306 = vadd.f32 %v82, %v218
  %v307 = vadd.f32 %v83, %v227
  %v308 = vadd.f32 %v84, %v236
  %v309 = vadd.f32 %v85, %v245
  %v310 = vadd.f32 %v86, %v254
  %v311 = vadd.f32 %v87, %v263
  %v312 = vadd.f32 %v88, %v272
  %v313 = vadd.f32 %v89, %v281
  %v314 = vadd.f32 %v90, %v290
  %v315 = vadd.f32 %v91, %v299
  %v316 = vsub.f32 0.0, %v300
  %v317 = vsub.f32 0.0, %v301
  %v318 = vsub.f32 0.0, %v302
  %v319 = vsub.f32 0.0, %v303
  %v320 = vsub.f32 0.0, %v304
  %v321 = vsub.f32 0.0, %v305
  %v322 = vsub.f32 0.0, %v306
  %v323 = vsub.f32 0.0, %v307
  %v324 = vsub.f32 0.0, %v308
  %v325 = vsub.f32 0.0, %v309
  %v326 = vsub.f32 0.0, %v310
  %v327 = vsub.f32 0.0, %v311
  %v328 = vsub.f32 0.0, %v312
  %v329 = vsub.f32 0.0, %v313
  %v330 = vsub.f32 0.0, %v314
  %v331 = vsub.f32 0.0, %v315
  %vm332 = vcmask 523264
  %v333 = vsel %vm332, %v316, 0.0
  %334 = vadd.xlane.f32.xlu0 %v333
  %v335 = vpop.xlane.xlu0 %334
  %v336 = vsel %vm332, %v317, 0.0
  %337 = vadd.xlane.f32.xlu0 %v336
  %v338 = vpop.xlane.xlu0 %337
  %v339 = vsel %vm332, %v318, 0.0
  %340 = vadd.xlane.f32.xlu0 %v339
  %v341 = vpop.xlane.xlu0 %340
  %v342 = vsel %vm332, %v319, 0.0
  %343 = vadd.xlane.f32.xlu0 %v342
  %v344 = vpop.xlane.xlu0 %343
  %v345 = vsel %vm332, %v320, 0.0
  %346 = vadd.xlane.f32.xlu0 %v345
  %v347 = vpop.xlane.xlu0 %346
  %v348 = vsel %vm332, %v321, 0.0
  %349 = vadd.xlane.f32.xlu0 %v348
  %v350 = vpop.xlane.xlu0 %349
  %v351 = vsel %vm332, %v322, 0.0
  %352 = vadd.xlane.f32.xlu0 %v351
  %v353 = vpop.xlane.xlu0 %352
  %v354 = vsel %vm332, %v323, 0.0
  %355 = vadd.xlane.f32.xlu0 %v354
  %v356 = vpop.xlane.xlu0 %355
  %v357 = vsel %vm332, %v324, 0.0
  %358 = vadd.xlane.f32.xlu0 %v357
  %v359 = vpop.xlane.xlu0 %358
  %v360 = vsel %vm332, %v325, 0.0
  %361 = vadd.xlane.f32.xlu0 %v360
  %v362 = vpop.xlane.xlu0 %361
  %v363 = vsel %vm332, %v326, 0.0
  %364 = vadd.xlane.f32.xlu0 %v363
  %v365 = vpop.xlane.xlu0 %364
  %v366 = vsel %vm332, %v327, 0.0
  %367 = vadd.xlane.f32.xlu0 %v366
  %v368 = vpop.xlane.xlu0 %367
  %v369 = vsel %vm332, %v328, 0.0
  %370 = vadd.xlane.f32.xlu0 %v369
  %v371 = vpop.xlane.xlu0 %370
  %v372 = vsel %vm332, %v329, 0.0
  %373 = vadd.xlane.f32.xlu0 %v372
  %v374 = vpop.xlane.xlu0 %373
  %v375 = vsel %vm332, %v330, 0.0
  %376 = vadd.xlane.f32.xlu0 %v375
  %v377 = vpop.xlane.xlu0 %376
  %v378 = vsel %vm332, %v331, 0.0
  %379 = vadd.xlane.f32.xlu0 %v378
  %v380 = vpop.xlane.xlu0 %379
  %v381 = vrcp.pop 64.0
  %v382 = vmul.f32 %v335, %v381
  %v383 = vmul.f32 %v338, %v381
  %v384 = vmul.f32 %v341, %v381
  %v385 = vmul.f32 %v344, %v381
  %v386 = vmul.f32 %v347, %v381
  %v387 = vmul.f32 %v350, %v381
  %v388 = vmul.f32 %v353, %v381
  %v389 = vmul.f32 %v356, %v381
  %v390 = vmul.f32 %v359, %v381
  %v391 = vmul.f32 %v362, %v381
  %v392 = vmul.f32 %v365, %v381
  %v393 = vmul.f32 %v368, %v381
  %v394 = vmul.f32 %v371, %v381
  %v395 = vmul.f32 %v374, %v381
  %v396 = vmul.f32 %v377, %v381
  %v397 = vmul.f32 %v380, %v381
  %v398 = vmin.f32 %v44, 0.0
  %v399 = vmin.f32 %v45, 0.0
  %v400 = vmin.f32 %v46, 0.0
  %v401 = vmin.f32 %v47, 0.0
  %v402 = vmin.f32 %v48, 0.0
  %v403 = vmin.f32 %v49, 0.0
  %v404 = vmin.f32 %v50, 0.0
  %v405 = vmin.f32 %v51, 0.0
  %v406 = vmin.f32 %v52, 0.0
  %v407 = vmin.f32 %v53, 0.0
  %v408 = vmin.f32 %v54, 0.0
  %v409 = vmin.f32 %v55, 0.0
  %v410 = vmin.f32 %v56, 0.0
  %v411 = vmin.f32 %v57, 0.0
  %v412 = vmin.f32 %v58, 0.0
  %v413 = vmin.f32 %v59, 0.0
  %v414 = vand.u32 2147483647, %v44
  %v415 = vand.u32 2147483647, %v45
  %v416 = vand.u32 2147483647, %v46
  %v417 = vand.u32 2147483647, %v47
  %v418 = vand.u32 2147483647, %v48
  %v419 = vand.u32 2147483647, %v49
  %v420 = vand.u32 2147483647, %v50
  %v421 = vand.u32 2147483647, %v51
  %v422 = vand.u32 2147483647, %v52
  %v423 = vand.u32 2147483647, %v53
  %v424 = vand.u32 2147483647, %v54
  %v425 = vand.u32 2147483647, %v55
  %v426 = vand.u32 2147483647, %v56
  %v427 = vand.u32 2147483647, %v57
  %v428 = vand.u32 2147483647, %v58
  %v429 = vand.u32 2147483647, %v59
  %v430 = vsub.f32 0.0, %v414
  %v431 = vsub.f32 0.0, %v415
  %v432 = vsub.f32 0.0, %v416
  %v433 = vsub.f32 0.0, %v417
  %v434 = vsub.f32 0.0, %v418
  %v435 = vsub.f32 0.0, %v419
  %v436 = vsub.f32 0.0, %v420
  %v437 = vsub.f32 0.0, %v421
  %v438 = vsub.f32 0.0, %v422
  %v439 = vsub.f32 0.0, %v423
  %v440 = vsub.f32 0.0, %v424
  %v441 = vsub.f32 0.0, %v425
  %v442 = vsub.f32 0.0, %v426
  %v443 = vsub.f32 0.0, %v427
  %v444 = vsub.f32 0.0, %v428
  %v445 = vsub.f32 0.0, %v429
  %v446 = vmul.f32 %v430, 1.442695
  %v447 = vpow.pop %v446
  %v448 = vmul.f32 %v431, 1.442695
  %v449 = vpow.pop %v448
  %v450 = vmul.f32 %v432, 1.442695
  %v451 = vpow.pop %v450
  %v452 = vmul.f32 %v433, 1.442695
  %v453 = vpow.pop %v452
  %v454 = vmul.f32 %v434, 1.442695
  %v455 = vpow.pop %v454
  %v456 = vmul.f32 %v435, 1.442695
  %v457 = vpow.pop %v456
  %v458 = vmul.f32 %v436, 1.442695
  %v459 = vpow.pop %v458
  %v460 = vmul.f32 %v437, 1.442695
  %v461 = vpow.pop %v460
  %v462 = vmul.f32 %v438, 1.442695
  %v463 = vpow.pop %v462
  %v464 = vmul.f32 %v439, 1.442695
  %v465 = vpow.pop %v464
  %v466 = vmul.f32 %v440, 1.442695
  %v467 = vpow.pop %v466
  %v468 = vmul.f32 %v441, 1.442695
  %v469 = vpow.pop %v468
  %v470 = vmul.f32 %v442, 1.442695
  %v471 = vpow.pop %v470
  %v472 = vmul.f32 %v443, 1.442695
  %v473 = vpow.pop %v472
  %v474 = vmul.f32 %v444, 1.442695
  %v475 = vpow.pop %v474
  %v476 = vmul.f32 %v445, 1.442695
  %v477 = vpow.pop %v476
  %v478 = vadd.f32 %v447, 1.0
  %v479 = vlog2.pop %v478
  %v480 = vmul.f32 %v479, 0.6931472
  %v481 = vmul.f32 -0.5, %v447
  %v482 = vadd.f32 %v481, 1.0
  %v483 = vmul.f32 %v482, %v447
  %v484 = vand.u32 2147483647, %v447
  %vm485 = vcmp.lt.f32.partialorder %v484, 0.0004427343
  %v486 = vsel %vm485, %v483, %v480
  %v487 = vadd.f32 %v449, 1.0
  %v488 = vlog2.pop %v487
  %v489 = vmul.f32 %v488, 0.6931472
  %v490 = vmul.f32 -0.5, %v449
  %v491 = vadd.f32 %v490, 1.0
  %v492 = vmul.f32 %v491, %v449
  %v493 = vand.u32 2147483647, %v449
  %vm494 = vcmp.lt.f32.partialorder %v493, 0.0004427343
  %v495 = vsel %vm494, %v492, %v489
  %v496 = vadd.f32 %v451, 1.0
  %v497 = vlog2.pop %v496
  %v498 = vmul.f32 %v497, 0.6931472
  %v499 = vmul.f32 -0.5, %v451
  %v500 = vadd.f32 %v499, 1.0
  %v501 = vmul.f32 %v500, %v451
  %v502 = vand.u32 2147483647, %v451
  %vm503 = vcmp.lt.f32.partialorder %v502, 0.0004427343
  %v504 = vsel %vm503, %v501, %v498
  %v505 = vadd.f32 %v453, 1.0
  %v506 = vlog2.pop %v505
  %v507 = vmul.f32 %v506, 0.6931472
  %v508 = vmul.f32 -0.5, %v453
  %v509 = vadd.f32 %v508, 1.0
  %v510 = vmul.f32 %v509, %v453
  %v511 = vand.u32 2147483647, %v453
  %vm512 = vcmp.lt.f32.partialorder %v511, 0.0004427343
  %v513 = vsel %vm512, %v510, %v507
  %v514 = vadd.f32 %v455, 1.0
  %v515 = vlog2.pop %v514
  %v516 = vmul.f32 %v515, 0.6931472
  %v517 = vmul.f32 -0.5, %v455
  %v518 = vadd.f32 %v517, 1.0
  %v519 = vmul.f32 %v518, %v455
  %v520 = vand.u32 2147483647, %v455
  %vm521 = vcmp.lt.f32.partialorder %v520, 0.0004427343
  %v522 = vsel %vm521, %v519, %v516
  %v523 = vadd.f32 %v457, 1.0
  %v524 = vlog2.pop %v523
  %v525 = vmul.f32 %v524, 0.6931472
  %v526 = vmul.f32 -0.5, %v457
  %v527 = vadd.f32 %v526, 1.0
  %v528 = vmul.f32 %v527, %v457
  %v529 = vand.u32 2147483647, %v457
  %vm530 = vcmp.lt.f32.partialorder %v529, 0.0004427343
  %v531 = vsel %vm530, %v528, %v525
  %v532 = vadd.f32 %v459, 1.0
  %v533 = vlog2.pop %v532
  %v534 = vmul.f32 %v533, 0.6931472
  %v535 = vmul.f32 -0.5, %v459
  %v536 = vadd.f32 %v535, 1.0
  %v537 = vmul.f32 %v536, %v459
  %v538 = vand.u32 2147483647, %v459
  %vm539 = vcmp.lt.f32.partialorder %v538, 0.0004427343
  %v540 = vsel %vm539, %v537, %v534
  %v541 = vadd.f32 %v461, 1.0
  %v542 = vlog2.pop %v541
  %v543 = vmul.f32 %v542, 0.6931472
  %v544 = vmul.f32 -0.5, %v461
  %v545 = vadd.f32 %v544, 1.0
  %v546 = vmul.f32 %v545, %v461
  %v547 = vand.u32 2147483647, %v461
  %vm548 = vcmp.lt.f32.partialorder %v547, 0.0004427343
  %v549 = vsel %vm548, %v546, %v543
  %v550 = vadd.f32 %v463, 1.0
  %v551 = vlog2.pop %v550
  %v552 = vmul.f32 %v551, 0.6931472
  %v553 = vmul.f32 -0.5, %v463
  %v554 = vadd.f32 %v553, 1.0
  %v555 = vmul.f32 %v554, %v463
  %v556 = vand.u32 2147483647, %v463
  %vm557 = vcmp.lt.f32.partialorder %v556, 0.0004427343
  %v558 = vsel %vm557, %v555, %v552
  %v559 = vadd.f32 %v465, 1.0
  %v560 = vlog2.pop %v559
  %v561 = vmul.f32 %v560, 0.6931472
  %v562 = vmul.f32 -0.5, %v465
  %v563 = vadd.f32 %v562, 1.0
  %v564 = vmul.f32 %v563, %v465
  %v565 = vand.u32 2147483647, %v465
  %vm566 = vcmp.lt.f32.partialorder %v565, 0.0004427343
  %v567 = vsel %vm566, %v564, %v561
  %v568 = vadd.f32 %v467, 1.0
  %v569 = vlog2.pop %v568
  %v570 = vmul.f32 %v569, 0.6931472
  %v571 = vmul.f32 -0.5, %v467
  %v572 = vadd.f32 %v571, 1.0
  %v573 = vmul.f32 %v572, %v467
  %v574 = vand.u32 2147483647, %v467
  %vm575 = vcmp.lt.f32.partialorder %v574, 0.0004427343
  %v576 = vsel %vm575, %v573, %v570
  %v577 = vadd.f32 %v469, 1.0
  %v578 = vlog2.pop %v577
  %v579 = vmul.f32 %v578, 0.6931472
  %v580 = vmul.f32 -0.5, %v469
  %v581 = vadd.f32 %v580, 1.0
  %v582 = vmul.f32 %v581, %v469
  %v583 = vand.u32 2147483647, %v469
  %vm584 = vcmp.lt.f32.partialorder %v583, 0.0004427343
  %v585 = vsel %vm584, %v582, %v579
  %v586 = vadd.f32 %v471, 1.0
  %v587 = vlog2.pop %v586
  %v588 = vmul.f32 %v587, 0.6931472
  %v589 = vmul.f32 -0.5, %v471
  %v590 = vadd.f32 %v589, 1.0
  %v591 = vmul.f32 %v590, %v471
  %v592 = vand.u32 2147483647, %v471
  %vm593 = vcmp.lt.f32.partialorder %v592, 0.0004427343
  %v594 = vsel %vm593, %v591, %v588
  %v595 = vadd.f32 %v473, 1.0
  %v596 = vlog2.pop %v595
  %v597 = vmul.f32 %v596, 0.6931472
  %v598 = vmul.f32 -0.5, %v473
  %v599 = vadd.f32 %v598, 1.0
  %v600 = vmul.f32 %v599, %v473
  %v601 = vand.u32 2147483647, %v473
  %vm602 = vcmp.lt.f32.partialorder %v601, 0.0004427343
  %v603 = vsel %vm602, %v600, %v597
  %v604 = vadd.f32 %v475, 1.0
  %v605 = vlog2.pop %v604
  %v606 = vmul.f32 %v605, 0.6931472
  %v607 = vmul.f32 -0.5, %v475
  %v608 = vadd.f32 %v607, 1.0
  %v609 = vmul.f32 %v608, %v475
  %v610 = vand.u32 2147483647, %v475
  %vm611 = vcmp.lt.f32.partialorder %v610, 0.0004427343
  %v612 = vsel %vm611, %v609, %v606
  %v613 = vadd.f32 %v477, 1.0
  %v614 = vlog2.pop %v613
  %v615 = vmul.f32 %v614, 0.6931472
  %v616 = vmul.f32 -0.5, %v477
  %v617 = vadd.f32 %v616, 1.0
  %v618 = vmul.f32 %v617, %v477
  %v619 = vand.u32 2147483647, %v477
  %vm620 = vcmp.lt.f32.partialorder %v619, 0.0004427343
  %v621 = vsel %vm620, %v618, %v615
  %v622 = vsub.f32 %v398, %v486
  %v623 = vsub.f32 %v399, %v495
  %v624 = vsub.f32 %v400, %v504
  %v625 = vsub.f32 %v401, %v513
  %v626 = vsub.f32 %v402, %v522
  %v627 = vsub.f32 %v403, %v531
  %v628 = vsub.f32 %v404, %v540
  %v629 = vsub.f32 %v405, %v549
  %v630 = vsub.f32 %v406, %v558
  %v631 = vsub.f32 %v407, %v567
  %v632 = vsub.f32 %v408, %v576
  %v633 = vsub.f32 %v409, %v585
  %v634 = vsub.f32 %v410, %v594
  %v635 = vsub.f32 %v411, %v603
  %v636 = vsub.f32 %v412, %v612
  %v637 = vsub.f32 %v413, %v621
  %v638 = vadd.f32 %v622, 0.0
  %v639 = vadd.f32 %v623, 0.0
  %v640 = vadd.f32 %v624, 0.0
  %v641 = vadd.f32 %v625, 0.0
  %v642 = vadd.f32 %v626, 0.0
  %v643 = vadd.f32 %v627, 0.0
  %v644 = vadd.f32 %v628, 0.0
  %v645 = vadd.f32 %v629, 0.0
  %v646 = vadd.f32 %v630, 0.0
  %v647 = vadd.f32 %v631, 0.0
  %v648 = vadd.f32 %v632, 0.0
  %v649 = vadd.f32 %v633, 0.0
  %v650 = vadd.f32 %v634, 0.0
  %v651 = vadd.f32 %v635, 0.0
  %v652 = vadd.f32 %v636, 0.0
  %v653 = vadd.f32 %v637, 0.0
  %v654 = vlaneseq
  %v655 = vshrl.u32 %v654, 7
  %v656 = vadd.s32 %v655, 8
  %v657 = vadd.s32 %v655, 16
  %v658 = vadd.s32 %v655, 24
  %v659 = vadd.s32 %v655, 32
  %v660 = vadd.s32 %v655, 40
  %v661 = vadd.s32 %v655, 48
  %v662 = vadd.s32 %v655, 56
  %v663 = vadd.s32 %v655, 64
  %v664 = vadd.s32 %v655, 72
  %v665 = vadd.s32 %v655, 80
  %v666 = vadd.s32 %v655, 88
  %v667 = vadd.s32 %v655, 96
  %v668 = vadd.s32 %v655, 104
  %v669 = vadd.s32 %v655, 112
  %v670 = vadd.s32 %v655, 120
  %v671 = vstv %s11
  %v672 = vadd.s32 %v655, %v671
  %v673 = vadd.s32 %v656, %v671
  %v674 = vadd.s32 %v657, %v671
  %v675 = vadd.s32 %v658, %v671
  %v676 = vadd.s32 %v659, %v671
  %v677 = vadd.s32 %v660, %v671
  %v678 = vadd.s32 %v661, %v671
  %v679 = vadd.s32 %v662, %v671
  %v680 = vadd.s32 %v663, %v671
  %v681 = vadd.s32 %v664, %v671
  %v682 = vadd.s32 %v665, %v671
  %v683 = vadd.s32 %v666, %v671
  %v684 = vadd.s32 %v667, %v671
  %v685 = vadd.s32 %v668, %v671
  %v686 = vadd.s32 %v669, %v671
  %v687 = vadd.s32 %v670, %v671
  %vm688 = vcmp.lt.s32.totalorder %v672, 8
  %vm689 = vcmp.lt.s32.totalorder %v673, 8
  %vm690 = vcmp.lt.s32.totalorder %v674, 8
  %vm691 = vcmp.lt.s32.totalorder %v675, 8
  %vm692 = vcmp.lt.s32.totalorder %v676, 8
  %vm693 = vcmp.lt.s32.totalorder %v677, 8
  %vm694 = vcmp.lt.s32.totalorder %v678, 8
  %vm695 = vcmp.lt.s32.totalorder %v679, 8
  %vm696 = vcmp.lt.s32.totalorder %v680, 8
  %vm697 = vcmp.lt.s32.totalorder %v681, 8
  %vm698 = vcmp.lt.s32.totalorder %v682, 8
  %vm699 = vcmp.lt.s32.totalorder %v683, 8
  %vm700 = vcmp.lt.s32.totalorder %v684, 8
  %vm701 = vcmp.lt.s32.totalorder %v685, 8
  %vm702 = vcmp.lt.s32.totalorder %v686, 8
  %vm703 = vcmp.lt.s32.totalorder %v687, 8
  %v704 = vsel %vm688, %v638, 0.0
  %v705 = vsel %vm689, %v639, 0.0
  %v706 = vsel %vm690, %v640, 0.0
  %v707 = vsel %vm691, %v641, 0.0
  %v708 = vsel %vm692, %v642, 0.0
  %v709 = vsel %vm693, %v643, 0.0
  %v710 = vsel %vm694, %v644, 0.0
  %v711 = vsel %vm695, %v645, 0.0
  %v712 = vsel %vm696, %v646, 0.0
  %v713 = vsel %vm697, %v647, 0.0
  %v714 = vsel %vm698, %v648, 0.0
  %v715 = vsel %vm699, %v649, 0.0
  %v716 = vsel %vm700, %v650, 0.0
  %v717 = vsel %vm701, %v651, 0.0
  %v718 = vsel %vm702, %v652, 0.0
  %v719 = vsel %vm703, %v653, 0.0
  %vm720 = vcmask 7168
  %721 = vst.msk [vmem:[%s2] sm:$0xff] %vm720, %v704
  %722 = vst.msk [vmem:[%s2 + $0x8] sm:$0xff] %vm720, %v705
  %723 = vst.msk [vmem:[%s2 + $0x10] sm:$0xff] %vm720, %v706
  %724 = vst.msk [vmem:[%s2 + $0x18] sm:$0xff] %vm720, %v707
  %725 = vst.msk [vmem:[%s2 + $0x20] sm:$0xff] %vm720, %v708
  %726 = vst.msk [vmem:[%s2 + $0x28] sm:$0xff] %vm720, %v709
  %727 = vst.msk [vmem:[%s2 + $0x30] sm:$0xff] %vm720, %v710
  %728 = vst.msk [vmem:[%s2 + $0x38] sm:$0xff] %vm720, %v711
  %729 = vst.msk [vmem:[%s2 + $0x40] sm:$0xff] %vm720, %v712
  %730 = vst.msk [vmem:[%s2 + $0x48] sm:$0xff] %vm720, %v713
  %731 = vst.msk [vmem:[%s2 + $0x50] sm:$0xff] %vm720, %v714
  %732 = vst.msk [vmem:[%s2 + $0x58] sm:$0xff] %vm720, %v715
  %733 = vst.msk [vmem:[%s2 + $0x60] sm:$0xff] %vm720, %v716
  %734 = vst.msk [vmem:[%s2 + $0x68] sm:$0xff] %vm720, %v717
  %735 = vst.msk [vmem:[%s2 + $0x70] sm:$0xff] %vm720, %v718
  %736 = vst.msk [vmem:[%s2 + $0x78] sm:$0xff] %vm720, %v719
  %v737 = vsel %vm688, %v382, 0.0
  %v738 = vsel %vm689, %v383, 0.0
  %v739 = vsel %vm690, %v384, 0.0
  %v740 = vsel %vm691, %v385, 0.0
  %v741 = vsel %vm692, %v386, 0.0
  %v742 = vsel %vm693, %v387, 0.0
  %v743 = vsel %vm694, %v388, 0.0
  %v744 = vsel %vm695, %v389, 0.0
  %v745 = vsel %vm696, %v390, 0.0
  %v746 = vsel %vm697, %v391, 0.0
  %v747 = vsel %vm698, %v392, 0.0
  %v748 = vsel %vm699, %v393, 0.0
  %v749 = vsel %vm700, %v394, 0.0
  %v750 = vsel %vm701, %v395, 0.0
  %v751 = vsel %vm702, %v396, 0.0
  %v752 = vsel %vm703, %v397, 0.0
  %vm753 = vcmask 15368
  %754 = vst.msk [vmem:[%s2] sm:$0xff] %vm753, %v737
  %755 = vst.msk [vmem:[%s2 + $0x8] sm:$0xff] %vm753, %v738
  %756 = vst.msk [vmem:[%s2 + $0x10] sm:$0xff] %vm753, %v739
  %757 = vst.msk [vmem:[%s2 + $0x18] sm:$0xff] %vm753, %v740
  %758 = vst.msk [vmem:[%s2 + $0x20] sm:$0xff] %vm753, %v741
  %759 = vst.msk [vmem:[%s2 + $0x28] sm:$0xff] %vm753, %v742
  %760 = vst.msk [vmem:[%s2 + $0x30] sm:$0xff] %vm753, %v743
  %761 = vst.msk [vmem:[%s2 + $0x38] sm:$0xff] %vm753, %v744
  %762 = vst.msk [vmem:[%s2 + $0x40] sm:$0xff] %vm753, %v745
  %763 = vst.msk [vmem:[%s2 + $0x48] sm:$0xff] %vm753, %v746
  %764 = vst.msk [vmem:[%s2 + $0x50] sm:$0xff] %vm753, %v747
  %765 = vst.msk [vmem:[%s2 + $0x58] sm:$0xff] %vm753, %v748
  %766 = vst.msk [vmem:[%s2 + $0x60] sm:$0xff] %vm753, %v749
  %767 = vst.msk [vmem:[%s2 + $0x68] sm:$0xff] %vm753, %v750
  %768 = vst.msk [vmem:[%s2 + $0x70] sm:$0xff] %vm753, %v751
  %769 = vst.msk [vmem:[%s2 + $0x78] sm:$0xff] %vm753, %v752
  // Predicated region
  $region10: #{tpu_custom_call.1} parent=0 // pred_check
    _
  $region11: #{tpu_custom_call.1} parent=0 // pred_check_branch
    %771 = sbr.rel (0) target = $region13
  $region12: #{tpu_custom_call.1} parent=0 // pred_region
    _
  $region13: #{tpu_custom_call.1} parent=0 // pred_fallthru
    _
  // Predicated region
  $region14: #{tpu_custom_call.1} parent=0 // pred_check
    _
  $region15: #{tpu_custom_call.1} parent=0 // pred_check_branch
    %773 = sbr.rel (0) target = $region17
  $region16: #{tpu_custom_call.1} parent=0 // pred_region
    _
  $region17: #{tpu_custom_call.1} parent=0 // pred_fallthru
    _

</llo_original>
